<compile_context>
chip_gen: v7x
topology: tpu7x:2x2x1
jax: 0.10.0
libtpu: 0.0.40
codegen_flags: <defaults>
</compile_context>

<pallas_src>
import functools

import jax
import jax.numpy as jnp
from jax import lax
from jax.experimental import pallas as pl
from jax.experimental.pallas import tpu as pltpu

_UNROLL = 4  # bounded unroll of the in-chunk Euler loop


def _ode_kernel(dts_ref, y0_ref, w1_ref, b1_ref, w2_ref, b2_ref, sol_ref, y_ref):
    """One (batch block, time chunk) of the Euler integration.

    sol_ref block: (T_CHUNK, TB, H) — trajectory rows for this chunk.
    y_ref scratch: (TB, H) f32    — Euler state carried across time chunks.
    Global trajectory row g = c * T_CHUNK + k; row 0 is y0 itself, row g >= 1
    is the state after g Euler steps with step size dts[g - 1].
    """
    c = pl.program_id(1)
    t_chunk, tb, h_dim = sol_ref.shape

    # (Re)initialize the carried state from y0 at the start of each batch block.
    @pl.when(c == 0)
    def _():
        y_ref[...] = y0_ref[...]

    # Weights loaded once per chunk (bf16, MXU-native); bias broadcasts hoisted
    # out of the time loop (JAX does not CSE broadcast_in_dim inside loops).
    w1 = w1_ref[...]
    w2 = w2_ref[...]
    b1b = jnp.broadcast_to(b1_ref[...], (tb, h_dim))
    b2b = jnp.broadcast_to(b2_ref[...], (tb, h_dim))

    base = c * t_chunk

    def step(k, y):
        g = base + k                                    # global trajectory row
        dt = dts_ref[jnp.maximum(g - 1, 0)]             # scalar step size (SMEM)
        # func(t, y): 2-layer tanh MLP (autonomous dynamics; t unused).
        z = jnp.dot(y.astype(jnp.bfloat16), w1,
                    preferred_element_type=jnp.float32) + b1b
        h = jnp.tanh(z)
        f = jnp.dot(h.astype(jnp.bfloat16), w2,
                    preferred_element_type=jnp.float32) + b2b
        # Euler solver: dy = dt * f ; y1 = y0 + dy.  Row g == 0 is y0 itself.
        y_new = jnp.where(g > 0, y + dt * f, y)
        sol_ref[k] = y_new
        return y_new

    # Serial time dependency -> in-kernel loop with bounded unroll.
    y_ref[...] = lax.fori_loop(0, t_chunk, step, y_ref[...], unroll=_UNROLL)


@functools.partial(jax.jit, static_argnames=("t_chunk",))
def neural_ode_forward(y0, t, w1, b1, w2, b2, *, t_chunk=64):
    """Euler-integrated trajectory of shape (len(t), *y0.shape); row 0 == y0."""
    B, H = y0.shape
    T = t.shape[0]
    y0 = y0.astype(jnp.float32)
    if T < 2:
        return y0[None]

    dts = (t[1:] - t[:-1]).astype(jnp.float32)           # (T - 1,)

    # --- Time chunking (pad with zero-dt steps so chunks divide evenly). ---
    t_chunk = min(t_chunk, T)
    n_chunks = pl.cdiv(T, t_chunk)
    t_pad = n_chunks * t_chunk
    if t_pad > T:
        dts = jnp.concatenate(
            [dts, jnp.zeros((t_pad - T,), jnp.float32)], axis=0)

    # --- Batch blocking: split across TensorCores when the batch allows it. ---
    tb = B // 2 if (B % 16 == 0) else B                   # keeps (8,128) tiling
    n_b = B // tb

    # bf16 weights (f32 accumulation inside the kernel); f32 state / biases.
    w1_bf = w1.astype(jnp.bfloat16)
    w2_bf = w2.astype(jnp.bfloat16)
    b1_f = b1.astype(jnp.float32)
    b2_f = b2.astype(jnp.float32)

    # Scoped-VMEM budget: weights + state + double-buffered output chunks with
    # headroom, clamped to stay within v7x's 64 MiB physical VMEM.
    work = (2 * tb * H * 4                  # y0 block (double-buffered)
            + 2 * 2 * H * H * 2             # W1, W2 (bf16)
            + 2 * 2 * H * 4                 # biases
            + 2 * t_chunk * tb * H * 4      # output chunk (double-buffered)
            + tb * H * 4)                   # carried-state scratch
    vmem_limit = int(min(max(4 * work, 32 * 1024 * 1024), 48 * 1024 * 1024))

    sol = pl.pallas_call(
        _ode_kernel,
        out_shape=jax.ShapeDtypeStruct((t_pad, B, H), jnp.float32),
        grid_spec=pltpu.PrefetchScalarGridSpec(
            num_scalar_prefetch=1,                         # dts -> SMEM
            grid=(n_b, n_chunks),
            in_specs=[
                pl.BlockSpec((tb, H), lambda b, c, dts: (b, 0)),   # y0
                pl.BlockSpec((H, H), lambda b, c, dts: (0, 0)),    # W1 (bf16)
                pl.BlockSpec((1, H), lambda b, c, dts: (0, 0)),    # b1
                pl.BlockSpec((H, H), lambda b, c, dts: (0, 0)),    # W2 (bf16)
                pl.BlockSpec((1, H), lambda b, c, dts: (0, 0)),    # b2
            ],
            out_specs=pl.BlockSpec((t_chunk, tb, H),
                                   lambda b, c, dts: (c, b, 0)),
            scratch_shapes=[pltpu.VMEM((tb, H), jnp.float32)],     # carried y
        ),
        compiler_params=pltpu.CompilerParams(
            dimension_semantics=("parallel", "arbitrary"),
            vmem_limit_bytes=vmem_limit,
        ),
    )(dts, y0, w1_bf, b1_f, w2_bf, b2_f)

    return sol[:T]


def _reference(y0, t, w1, b1, w2, b2):
    """Pure-JAX f32 reference mirroring the PyTorch loop exactly."""
    sol = [y0]
    y = y0
    for k in range(t.shape[0] - 1):
        dt = t[k + 1] - t[k]
        f = jnp.tanh(y @ w1 + b1) @ w2 + b2
        y = y + dt * f
        sol.append(y)
    return jnp.stack(sol, axis=0)


if __name__ == "__main__":
    B, H, T = 16, 128, 9   # batch, hidden (state dim), number of time points
    # Note: for real workloads, batch >= 128 (v5e) / >= 256 (v6e/v7x) fills the
    # MXU far better; kept small for the test.

    key = jax.random.PRNGKey(0)
    k_y0, k_w1, k_b1, k_w2, k_b2 = jax.random.split(key, 5)

    y0 = jax.random.normal(k_y0, (B, H), dtype=jnp.float32)
    w1 = jax.random.normal(k_w1, (H, H), dtype=jnp.float32) * (1.0 / jnp.sqrt(H))
    b1 = jax.random.normal(k_b1, (1, H), dtype=jnp.float32) * 0.1
    w2 = jax.random.normal(k_w2, (H, H), dtype=jnp.float32) * (1.0 / jnp.sqrt(H))
    b2 = jax.random.normal(k_b2, (1, H), dtype=jnp.float32) * 0.1

    t = jnp.linspace(0.0, 1.0, T, dtype=jnp.float32)

    # t_chunk=4 exercises the multi-chunk + padding path (T=9 -> 3 chunks) and
    # the 2-block batch split.
    out = neural_ode_forward(y0, t, w1, b1, w2, b2, t_chunk=4)
    out = jax.block_until_ready(out)

    ref = _reference(y0, t, w1, b1, w2, b2)
    assert out.shape == (T, B, H), out.shape
    assert jnp.allclose(out[0], y0), "row 0 must equal y0"
    # Tolerance relaxed vs. pure f32 because matmul inputs are bf16 (with f32
    # accumulation) and error compounds over the time steps.
    assert jnp.allclose(out, ref, atol=5e-2, rtol=5e-2), "mismatch vs reference"

    print("KERNEL_OK")
</pallas_src>

<mosaic_0001>
module attributes {stable_mosaic.version = 11 : i64} {
  func.func @_ode_kernel(%arg0: i32, %arg1: i32, %arg2: memref<11xf32, #tpu.memory_space<smem>>, %arg3: memref<8x128xf32, #tpu.memory_space<vmem>>, %arg4: memref<128x128xbf16, #tpu.memory_space<vmem>>, %arg5: memref<1x128xf32, #tpu.memory_space<vmem>>, %arg6: memref<128x128xbf16, #tpu.memory_space<vmem>>, %arg7: memref<1x128xf32, #tpu.memory_space<vmem>>, %arg8: memref<4x8x128xf32, #tpu.memory_space<vmem>>, %arg9: memref<8x128xf32, #tpu.memory_space<vmem>>) attributes {dimension_semantics = [#tpu.dimension_semantics<parallel>, #tpu.dimension_semantics<arbitrary>], iteration_bounds = array<i64: 2, 3>, scalar_prefetch = 1 : i64, scratch_operands = 1 : i64, tpu.core_type = #tpu.core_type<tc>, window_params = [{transform_indices = @transform_0, window_bounds = array<i64: 8, 128>}, {pipeline_mode = #tpu.pipeline_mode<synchronous>, transform_indices = @transform_1, window_bounds = array<i64: 128, 128>}, {pipeline_mode = #tpu.pipeline_mode<synchronous>, transform_indices = @transform_2, window_bounds = array<i64: 1, 128>}, {pipeline_mode = #tpu.pipeline_mode<synchronous>, transform_indices = @transform_3, window_bounds = array<i64: 128, 128>}, {pipeline_mode = #tpu.pipeline_mode<synchronous>, transform_indices = @transform_4, window_bounds = array<i64: 1, 128>}, {transform_indices = @transform_5, window_bounds = array<i64: 4, 8, 128>}]} {
    %c0_i32 = arith.constant 0 : i32
    %0 = arith.cmpi eq, %arg1, %c0_i32 : i32
    %1 = arith.extui %0 : i1 to i32
    %c0_i32_0 = arith.constant 0 : i32
    %2 = arith.cmpi ne, %1, %c0_i32_0 : i32
    scf.if %2 {
      %c0_41 = arith.constant 0 : index
      %c0_42 = arith.constant 0 : index
      %98 = vector.load %arg3[%c0_41, %c0_42] : memref<8x128xf32, #tpu.memory_space<vmem>>, vector<8x128xf32>
      %c0_43 = arith.constant 0 : index
      %c0_44 = arith.constant 0 : index
      %99 = vector.load %arg9[%c0_43, %c0_44] : memref<8x128xf32, #tpu.memory_space<vmem>>, vector<8x128xf32>
      tpu.vector_store %arg9[%c0_43, %c0_44], %98 {strides = array<i32>} : memref<8x128xf32, #tpu.memory_space<vmem>>, vector<8x128xf32>,
    } else {
    }
    %c0 = arith.constant 0 : index
    %c0_1 = arith.constant 0 : index
    %3 = vector.load %arg4[%c0, %c0_1] : memref<128x128xbf16, #tpu.memory_space<vmem>>, vector<128x128xbf16>
    %c0_2 = arith.constant 0 : index
    %c0_3 = arith.constant 0 : index
    %4 = vector.load %arg6[%c0_2, %c0_3] : memref<128x128xbf16, #tpu.memory_space<vmem>>, vector<128x128xbf16>
    %c0_4 = arith.constant 0 : index
    %c0_5 = arith.constant 0 : index
    %5 = vector.load %arg5[%c0_4, %c0_5] : memref<1x128xf32, #tpu.memory_space<vmem>>, vector<1x128xf32>
    %6 = vector.shape_cast %5 : vector<1x128xf32> to vector<1x128xf32>
    %7 = vector.broadcast %6 : vector<1x128xf32> to vector<8x128xf32>
    %c0_6 = arith.constant 0 : index
    %c0_7 = arith.constant 0 : index
    %8 = vector.load %arg7[%c0_6, %c0_7] : memref<1x128xf32, #tpu.memory_space<vmem>>, vector<1x128xf32>
    %9 = vector.shape_cast %8 : vector<1x128xf32> to vector<1x128xf32>
    %10 = vector.broadcast %9 : vector<1x128xf32> to vector<8x128xf32>
    %c4_i32 = arith.constant 4 : i32
    %11 = arith.muli %arg1, %c4_i32 : i32
    %c0_8 = arith.constant 0 : index
    %c0_9 = arith.constant 0 : index
    %12 = vector.load %arg9[%c0_8, %c0_9] : memref<8x128xf32, #tpu.memory_space<vmem>>, vector<8x128xf32>
    %c0_i32_10 = arith.constant 0 : i32
    %13 = arith.addi %11, %c0_i32_10 : i32
    %c1_i32 = arith.constant 1 : i32
    %14 = arith.subi %13, %c1_i32 : i32
    %c0_i32_11 = arith.constant 0 : i32
    %15 = arith.maxsi %14, %c0_i32_11 : i32
    %16 = arith.index_cast %15 : i32 to index
    %17 = memref.load %arg2[%16] : memref<11xf32, #tpu.memory_space<smem>>
    %18 = arith.truncf %12 : vector<8x128xf32> to vector<8x128xbf16>
    %cst = arith.constant dense<0.000000e+00> : vector<8x128xf32>
    %19 = tpu.matmul %18, %3, %cst {dimension_numbers = #tpu.dot_dimension_numbers<[1], [0], [0], [1], [0, 0, 1, 1], [], []>} : vector<8x128xbf16>, vector<128x128xbf16>, vector<8x128xf32> -> vector<8x128xf32>
    %20 = arith.addf %19, %7 : vector<8x128xf32>
    %21 = math.tanh %20 : vector<8x128xf32>
    %22 = arith.truncf %21 : vector<8x128xf32> to vector<8x128xbf16>
    %cst_12 = arith.constant dense<0.000000e+00> : vector<8x128xf32>
    %23 = tpu.matmul %22, %4, %cst_12 {dimension_numbers = #tpu.dot_dimension_numbers<[1], [0], [0], [1], [0, 0, 1, 1], [], []>} : vector<8x128xbf16>, vector<128x128xbf16>, vector<8x128xf32> -> vector<8x128xf32>
    %24 = arith.addf %23, %10 : vector<8x128xf32>
    %c0_i32_13 = arith.constant 0 : i32
    %25 = arith.cmpi sgt, %13, %c0_i32_13 : i32
    %26 = vector.broadcast %17 : f32 to vector<8x128xf32>
    %27 = arith.mulf %26, %24 : vector<8x128xf32>
    %28 = arith.addf %12, %27 : vector<8x128xf32>
    %29 = arith.select %25, %28, %12 : vector<8x128xf32>
    %30 = arith.index_cast %c0_i32_10 : i32 to index
    %c0_14 = arith.constant 0 : index
    %c0_15 = arith.constant 0 : index
    %31 = vector.load %arg8[%30, %c0_14, %c0_15] : memref<4x8x128xf32, #tpu.memory_space<vmem>>, vector<1x8x128xf32>
    %32 = vector.shape_cast %31 : vector<1x8x128xf32> to vector<8x128xf32>
    %33 = vector.shape_cast %29 : vector<8x128xf32> to vector<1x8x128xf32>
    tpu.vector_store %arg8[%30, %c0_14, %c0_15], %33 {strides = array<i32>} : memref<4x8x128xf32, #tpu.memory_space<vmem>>, vector<1x8x128xf32>,
    %c1_i32_16 = arith.constant 1 : i32
    %34 = arith.addi %11, %c1_i32_16 : i32
    %c1_i32_17 = arith.constant 1 : i32
    %35 = arith.subi %34, %c1_i32_17 : i32
    %c0_i32_18 = arith.constant 0 : i32
    %36 = arith.maxsi %35, %c0_i32_18 : i32
    %37 = arith.index_cast %36 : i32 to index
    %38 = memref.load %arg2[%37] : memref<11xf32, #tpu.memory_space<smem>>
    %39 = arith.truncf %29 : vector<8x128xf32> to vector<8x128xbf16>
    %cst_19 = arith.constant dense<0.000000e+00> : vector<8x128xf32>
    %40 = tpu.matmul %39, %3, %cst_19 {dimension_numbers = #tpu.dot_dimension_numbers<[1], [0], [0], [1], [0, 0, 1, 1], [], []>} : vector<8x128xbf16>, vector<128x128xbf16>, vector<8x128xf32> -> vector<8x128xf32>
    %41 = arith.addf %40, %7 : vector<8x128xf32>
    %42 = math.tanh %41 : vector<8x128xf32>
    %43 = arith.truncf %42 : vector<8x128xf32> to vector<8x128xbf16>
    %cst_20 = arith.constant dense<0.000000e+00> : vector<8x128xf32>
    %44 = tpu.matmul %43, %4, %cst_20 {dimension_numbers = #tpu.dot_dimension_numbers<[1], [0], [0], [1], [0, 0, 1, 1], [], []>} : vector<8x128xbf16>, vector<128x128xbf16>, vector<8x128xf32> -> vector<8x128xf32>
    %45 = arith.addf %44, %10 : vector<8x128xf32>
    %c0_i32_21 = arith.constant 0 : i32
    %46 = arith.cmpi sgt, %34, %c0_i32_21 : i32
    %47 = vector.broadcast %38 : f32 to vector<8x128xf32>
    %48 = arith.mulf %47, %45 : vector<8x128xf32>
    %49 = arith.addf %29, %48 : vector<8x128xf32>
    %50 = arith.select %46, %49, %29 : vector<8x128xf32>
    %51 = arith.index_cast %c1_i32_16 : i32 to index
    %c0_22 = arith.constant 0 : index
    %c0_23 = arith.constant 0 : index
    %52 = vector.load %arg8[%51, %c0_22, %c0_23] : memref<4x8x128xf32, #tpu.memory_space<vmem>>, vector<1x8x128xf32>
    %53 = vector.shape_cast %52 : vector<1x8x128xf32> to vector<8x128xf32>
    %54 = vector.shape_cast %50 : vector<8x128xf32> to vector<1x8x128xf32>
    tpu.vector_store %arg8[%51, %c0_22, %c0_23], %54 {strides = array<i32>} : memref<4x8x128xf32, #tpu.memory_space<vmem>>, vector<1x8x128xf32>,
    %c2_i32 = arith.constant 2 : i32
    %55 = arith.addi %11, %c2_i32 : i32
    %c1_i32_24 = arith.constant 1 : i32
    %56 = arith.subi %55, %c1_i32_24 : i32
    %c0_i32_25 = arith.constant 0 : i32
    %57 = arith.maxsi %56, %c0_i32_25 : i32
    %58 = arith.index_cast %57 : i32 to index
    %59 = memref.load %arg2[%58] : memref<11xf32, #tpu.memory_space<smem>>
    %60 = arith.truncf %50 : vector<8x128xf32> to vector<8x128xbf16>
    %cst_26 = arith.constant dense<0.000000e+00> : vector<8x128xf32>
    %61 = tpu.matmul %60, %3, %cst_26 {dimension_numbers = #tpu.dot_dimension_numbers<[1], [0], [0], [1], [0, 0, 1, 1], [], []>} : vector<8x128xbf16>, vector<128x128xbf16>, vector<8x128xf32> -> vector<8x128xf32>
    %62 = arith.addf %61, %7 : vector<8x128xf32>
    %63 = math.tanh %62 : vector<8x128xf32>
    %64 = arith.truncf %63 : vector<8x128xf32> to vector<8x128xbf16>
    %cst_27 = arith.constant dense<0.000000e+00> : vector<8x128xf32>
    %65 = tpu.matmul %64, %4, %cst_27 {dimension_numbers = #tpu.dot_dimension_numbers<[1], [0], [0], [1], [0, 0, 1, 1], [], []>} : vector<8x128xbf16>, vector<128x128xbf16>, vector<8x128xf32> -> vector<8x128xf32>
    %66 = arith.addf %65, %10 : vector<8x128xf32>
    %c0_i32_28 = arith.constant 0 : i32
    %67 = arith.cmpi sgt, %55, %c0_i32_28 : i32
    %68 = vector.broadcast %59 : f32 to vector<8x128xf32>
    %69 = arith.mulf %68, %66 : vector<8x128xf32>
    %70 = arith.addf %50, %69 : vector<8x128xf32>
    %71 = arith.select %67, %70, %50 : vector<8x128xf32>
    %72 = arith.index_cast %c2_i32 : i32 to index
    %c0_29 = arith.constant 0 : index
    %c0_30 = arith.constant 0 : index
    %73 = vector.load %arg8[%72, %c0_29, %c0_30] : memref<4x8x128xf32, #tpu.memory_space<vmem>>, vector<1x8x128xf32>
    %74 = vector.shape_cast %73 : vector<1x8x128xf32> to vector<8x128xf32>
    %75 = vector.shape_cast %71 : vector<8x128xf32> to vector<1x8x128xf32>
    tpu.vector_store %arg8[%72, %c0_29, %c0_30], %75 {strides = array<i32>} : memref<4x8x128xf32, #tpu.memory_space<vmem>>, vector<1x8x128xf32>,
    %c3_i32 = arith.constant 3 : i32
    %76 = arith.addi %11, %c3_i32 : i32
    %c1_i32_31 = arith.constant 1 : i32
    %77 = arith.subi %76, %c1_i32_31 : i32
    %c0_i32_32 = arith.constant 0 : i32
    %78 = arith.maxsi %77, %c0_i32_32 : i32
    %79 = arith.index_cast %78 : i32 to index
    %80 = memref.load %arg2[%79] : memref<11xf32, #tpu.memory_space<smem>>
    %81 = arith.truncf %71 : vector<8x128xf32> to vector<8x128xbf16>
    %cst_33 = arith.constant dense<0.000000e+00> : vector<8x128xf32>
    %82 = tpu.matmul %81, %3, %cst_33 {dimension_numbers = #tpu.dot_dimension_numbers<[1], [0], [0], [1], [0, 0, 1, 1], [], []>} : vector<8x128xbf16>, vector<128x128xbf16>, vector<8x128xf32> -> vector<8x128xf32>
    %83 = arith.addf %82, %7 : vector<8x128xf32>
    %84 = math.tanh %83 : vector<8x128xf32>
    %85 = arith.truncf %84 : vector<8x128xf32> to vector<8x128xbf16>
    %cst_34 = arith.constant dense<0.000000e+00> : vector<8x128xf32>
    %86 = tpu.matmul %85, %4, %cst_34 {dimension_numbers = #tpu.dot_dimension_numbers<[1], [0], [0], [1], [0, 0, 1, 1], [], []>} : vector<8x128xbf16>, vector<128x128xbf16>, vector<8x128xf32> -> vector<8x128xf32>
    %87 = arith.addf %86, %10 : vector<8x128xf32>
    %c0_i32_35 = arith.constant 0 : i32
    %88 = arith.cmpi sgt, %76, %c0_i32_35 : i32
    %89 = vector.broadcast %80 : f32 to vector<8x128xf32>
    %90 = arith.mulf %89, %87 : vector<8x128xf32>
    %91 = arith.addf %71, %90 : vector<8x128xf32>
    %92 = arith.select %88, %91, %71 : vector<8x128xf32>
    %93 = arith.index_cast %c3_i32 : i32 to index
    %c0_36 = arith.constant 0 : index
    %c0_37 = arith.constant 0 : index
    %94 = vector.load %arg8[%93, %c0_36, %c0_37] : memref<4x8x128xf32, #tpu.memory_space<vmem>>, vector<1x8x128xf32>
    %95 = vector.shape_cast %94 : vector<1x8x128xf32> to vector<8x128xf32>
    %96 = vector.shape_cast %92 : vector<8x128xf32> to vector<1x8x128xf32>
    tpu.vector_store %arg8[%93, %c0_36, %c0_37], %96 {strides = array<i32>} : memref<4x8x128xf32, #tpu.memory_space<vmem>>, vector<1x8x128xf32>,
    %c4_i32_38 = arith.constant 4 : i32
    %c0_39 = arith.constant 0 : index
    %c0_40 = arith.constant 0 : index
    %97 = vector.load %arg9[%c0_39, %c0_40] : memref<8x128xf32, #tpu.memory_space<vmem>>, vector<8x128xf32>
    tpu.vector_store %arg9[%c0_39, %c0_40], %92 {strides = array<i32>} : memref<8x128xf32, #tpu.memory_space<vmem>>, vector<8x128xf32>,
    return
  }
  func.func @transform_0(%arg0: i32, %arg1: i32, %arg2: memref<11xf32, #tpu.memory_space<smem>>) -> (i32, i32) {
    %c0_i32 = arith.constant 0 : i32
    %c0_i32_0 = arith.constant 0 : i32
    return %arg0, %c0_i32 : i32, i32
  }
  func.func @transform_1(%arg0: i32, %arg1: i32, %arg2: memref<11xf32, #tpu.memory_space<smem>>) -> (i32, i32) {
    %c0_i32 = arith.constant 0 : i32
    %c0_i32_0 = arith.constant 0 : i32
    %c0_i32_1 = arith.constant 0 : i32
    return %c0_i32, %c0_i32_0 : i32, i32
  }
  func.func @transform_2(%arg0: i32, %arg1: i32, %arg2: memref<11xf32, #tpu.memory_space<smem>>) -> (i32, i32) {
    %c0_i32 = arith.constant 0 : i32
    %c0_i32_0 = arith.constant 0 : i32
    %c0_i32_1 = arith.constant 0 : i32
    return %c0_i32, %c0_i32_0 : i32, i32
  }
  func.func @transform_3(%arg0: i32, %arg1: i32, %arg2: memref<11xf32, #tpu.memory_space<smem>>) -> (i32, i32) {
    %c0_i32 = arith.constant 0 : i32
    %c0_i32_0 = arith.constant 0 : i32
    %c0_i32_1 = arith.constant 0 : i32
    return %c0_i32, %c0_i32_0 : i32, i32
  }
  func.func @transform_4(%arg0: i32, %arg1: i32, %arg2: memref<11xf32, #tpu.memory_space<smem>>) -> (i32, i32) {
    %c0_i32 = arith.constant 0 : i32
    %c0_i32_0 = arith.constant 0 : i32
    %c0_i32_1 = arith.constant 0 : i32
    return %c0_i32, %c0_i32_0 : i32, i32
  }
  func.func @transform_5(%arg0: i32, %arg1: i32, %arg2: memref<11xf32, #tpu.memory_space<smem>>) -> (i32, i32, i32) {
    %c0_i32 = arith.constant 0 : i32
    %c0_i32_0 = arith.constant 0 : i32
    return %arg1, %arg0, %c0_i32 : i32, i32, i32
  }
}

</mosaic_0001>

<llo_original>
// kernel: neural_ode_forward.1
$region0: #{neural_ode_forward.1}
  #allocation0 [shape = 'u32[]', space=smem, size = 0x4, offset = 0x4, fixed_abs, tag = 'smem constant byte address 0x4 - core index']
  #allocation1 [shape = 'u32[144,128]{1,0:T(1,128)}', space=vmem, size = 0x12000, scoped, tag = 'internal scratch']
  #allocation2 [shape = 'f32[8,128]{1,0:T(8,128)}', space=vmem, size = 0x1000, scoped, tag = 'scratch operand']
  #allocation3 [shape = 's32[1]{0}', space=sflag, size = 0x4, scoped, tag = 'scoped memory for neural_ode_forward.1']
  #allocation4 [shape = 'u8[512]{0}', space=smem, size = 0x200, scoped, tag = 'prefetched SMEM operand 0']
  %s0 = inlined_call_operand.vmem [shape: f32[11], index: 0, kind: input, shape index: {}]
  %s1 = inlined_call_operand.vmem [shape: f32[16,128], index: 1, kind: input, shape index: {}]
  %s2 = inlined_call_operand.vmem [shape: bf16[128,128], index: 2, kind: input, shape index: {}]
  %s3 = inlined_call_operand.vmem [shape: f32[1,128], index: 3, kind: input, shape index: {}]
  %s4 = inlined_call_operand.vmem [shape: bf16[128,128], index: 4, kind: input, shape index: {}]
  %s5 = inlined_call_operand.vmem [shape: f32[1,128], index: 5, kind: input, shape index: {}]
  %s6 = inlined_call_operand.vmem [shape: f32[12,16,128], index: 6, kind: output, shape index: {}]
  %s7 = sld [smem:[#allocation0]]
  $region91: #{neural_ode_forward.1} parent=0
    _
  %s9 = ssub.s32 1, %s7
  %s10 = scalar_select 0, %s9, %s7
  %s11 = sshll.u32 %s0, 4
  %s12 = int_to_ptr.vmem [resolvable:$true] %s11
  %14 = dma.vmem_to_smem %s12, 16, [#allocation4], [#allocation3]
  %15 = dma.done [#allocation3], 16
  %16 = sfence
  $region1: #{neural_ode_forward.1} parent=0
    #allocation5 [shape = 'u8[32768]{0}', space=vmem, size = 0x8000, scoped, tag = 'output window, operand 0']
    loop: start=0, step=1, limit=8
    $region2: #{neural_ode_forward.1} parent=1 // loop_pre_header
      _
    $region3: #{neural_ode_forward.1} parent=1 // loop_header
      %s18 = sphi 0, %s22
      %p19 = scmp.ge.s32.totalorder %s18, 8
      %s25 = sphi 0, %s37
      %s26 = sphi 0, %s33
      %s27 = sphi 0, %s25
      %s28 = sphi 0, %s26
      %s29 = sphi 0, %s27
      %s30 = sphi 0, %s28
      %s40 = sphi 0, %s42
      %s43 = sphi 0, %s40
      %s44 = sphi 0, %s43
      %s60 = sphi 0, %s44
      %s64 = sphi 0, %s64
      %s66 = sphi 0, %s64
      %s67 = sphi 0, %s66
      %s81 = sphi 0, %s67
      %s85 = sphi 0, %s85
      %s87 = sphi 0, %s85
      %s88 = sphi 0, %s87
      %s102 = sphi 0, %s88
      %s106 = sphi 0, %s106
      %s108 = sphi 0, %s106
      %s109 = sphi 0, %s108
      %s123 = sphi 0, %s109
      %s127 = sphi 0, %s127
      %s129 = sphi 0, %s127
      %s130 = sphi 0, %s129
      %s144 = sphi 0, %s130
      %s152 = sphi 0, %s154
      %s155 = sphi 0, %s152
      %s156 = sphi 0, %s155
      %s172 = sphi 0, %s156
    $region4: #{neural_ode_forward.1} parent=1 // loop_header_branch
      %21 = sbr.rel (%p19) target = $region8
    $region5: #{neural_ode_forward.1} parent=1 // loop_body
      %s23 = ssub.s32 %s18, 1
      %s24 = ssub.s32 %s18, 2
      %s31 = sadd.s32 1, %s26
      %p32 = scmp.ge.s32.totalorder %s31, 3
      %s33 = scalar_select %p32, 0, %s31
      %s34 = sadd.s32 1, %s25
      %s35 = scalar_select %p32, %s34, %s25
      %p36 = scmp.ge.s32.totalorder %s35, 2
      %s37 = scalar_select %p36, 0, %s35
      %s38 = ssub.s32 %s25, %s37
      %p39 = scmp.eq.s32.totalorder %s38, 0
      %s41 = sadd.s32 %s40, 1
      %s42 = scalar_select %p39, %s40, %s41
      %p45 = pneg %p39
      %p46 = scmp.eq.s32.totalorder %s18, 5
      %p47 = por %p45, %p46
      %p48 = scmp.ne.s32.totalorder %s40, %s43
      %p49 = scmp.eq.s32.totalorder %s18, 0
      %p50 = por %p48, %p49
      %p51 = scmp.ne.s32.totalorder %s40, %s43
      %p52 = scmp.eq.s32.totalorder %s23, 5
      %p53 = por %p51, %p52
      %p54 = scmp.ne.s32.totalorder %s43, %s44
      %p55 = scmp.eq.s32.totalorder %s23, 0
      %p56 = por %p54, %p55
      %p57 = scmp.ne.s32.totalorder %s43, %s44
      %p58 = scmp.eq.s32.totalorder %s24, 5
      %p59 = por %p57, %p58
      %p61 = scmp.ne.s32.totalorder %s44, %s60
      %p62 = scmp.eq.s32.totalorder %s24, 0
      %p63 = por %p61, %p62
      %s65 = sadd.s32 %s64, 1
      %p68 = scmp.eq.s32.totalorder %s18, 5
      %p69 = scmp.ne.s32.totalorder %s64, %s66
      %p70 = scmp.eq.s32.totalorder %s18, 0
      %p71 = por %p69, %p70
      %p72 = scmp.ne.s32.totalorder %s64, %s66
      %p73 = scmp.eq.s32.totalorder %s23, 5
      %p74 = por %p72, %p73
      %p75 = scmp.ne.s32.totalorder %s66, %s67
      %p76 = scmp.eq.s32.totalorder %s23, 0
      %p77 = por %p75, %p76
      %p78 = scmp.ne.s32.totalorder %s66, %s67
      %p79 = scmp.eq.s32.totalorder %s24, 5
      %p80 = por %p78, %p79
      %p82 = scmp.ne.s32.totalorder %s67, %s81
      %p83 = scmp.eq.s32.totalorder %s24, 0
      %p84 = por %p82, %p83
      %s86 = sadd.s32 %s85, 1
      %p89 = scmp.eq.s32.totalorder %s18, 5
      %p90 = scmp.ne.s32.totalorder %s85, %s87
      %p91 = scmp.eq.s32.totalorder %s18, 0
      %p92 = por %p90, %p91
      %p93 = scmp.ne.s32.totalorder %s85, %s87
      %p94 = scmp.eq.s32.totalorder %s23, 5
      %p95 = por %p93, %p94
      %p96 = scmp.ne.s32.totalorder %s87, %s88
      %p97 = scmp.eq.s32.totalorder %s23, 0
      %p98 = por %p96, %p97
      %p99 = scmp.ne.s32.totalorder %s87, %s88
      %p100 = scmp.eq.s32.totalorder %s24, 5
      %p101 = por %p99, %p100
      %p103 = scmp.ne.s32.totalorder %s88, %s102
      %p104 = scmp.eq.s32.totalorder %s24, 0
      %p105 = por %p103, %p104
      %s107 = sadd.s32 %s106, 1
      %p110 = scmp.eq.s32.totalorder %s18, 5
      %p111 = scmp.ne.s32.totalorder %s106, %s108
      %p112 = scmp.eq.s32.totalorder %s18, 0
      %p113 = por %p111, %p112
      %p114 = scmp.ne.s32.totalorder %s106, %s108
      %p115 = scmp.eq.s32.totalorder %s23, 5
      %p116 = por %p114, %p115
      %p117 = scmp.ne.s32.totalorder %s108, %s109
      %p118 = scmp.eq.s32.totalorder %s23, 0
      %p119 = por %p117, %p118
      %p120 = scmp.ne.s32.totalorder %s108, %s109
      %p121 = scmp.eq.s32.totalorder %s24, 5
      %p122 = por %p120, %p121
      %p124 = scmp.ne.s32.totalorder %s109, %s123
      %p125 = scmp.eq.s32.totalorder %s24, 0
      %p126 = por %p124, %p125
      %s128 = sadd.s32 %s127, 1
      %p131 = scmp.eq.s32.totalorder %s18, 5
      %p132 = scmp.ne.s32.totalorder %s127, %s129
      %p133 = scmp.eq.s32.totalorder %s18, 0
      %p134 = por %p132, %p133
      %p135 = scmp.ne.s32.totalorder %s127, %s129
      %p136 = scmp.eq.s32.totalorder %s23, 5
      %p137 = por %p135, %p136
      %p138 = scmp.ne.s32.totalorder %s129, %s130
      %p139 = scmp.eq.s32.totalorder %s23, 0
      %p140 = por %p138, %p139
      %p141 = scmp.ne.s32.totalorder %s129, %s130
      %p142 = scmp.eq.s32.totalorder %s24, 5
      %p143 = por %p141, %p142
      %p145 = scmp.ne.s32.totalorder %s130, %s144
      %p146 = scmp.eq.s32.totalorder %s24, 0
      %p147 = por %p145, %p146
      %s148 = ssub.s32 %s26, %s33
      %s149 = ssub.s32 %s25, %s37
      %s150 = sor.u32 %s148, %s149
      %p151 = scmp.eq.s32.totalorder %s150, 0
      %s153 = sadd.s32 %s152, 1
      %s154 = scalar_select %p151, %s152, %s153
      %p157 = pneg %p151
      %p158 = scmp.eq.s32.totalorder %s18, 5
      %p159 = por %p157, %p158
      %p160 = scmp.ne.s32.totalorder %s152, %s155
      %p161 = scmp.eq.s32.totalorder %s18, 0
      %p162 = por %p160, %p161
      %p163 = scmp.ne.s32.totalorder %s152, %s155
      %p164 = scmp.eq.s32.totalorder %s23, 5
      %p165 = por %p163, %p164
      %p166 = scmp.ne.s32.totalorder %s155, %s156
      %p167 = scmp.eq.s32.totalorder %s23, 0
      %p168 = por %p166, %p167
      %p169 = scmp.ne.s32.totalorder %s155, %s156
      %p170 = scmp.eq.s32.totalorder %s24, 5
      %p171 = por %p169, %p170
      %p173 = scmp.ne.s32.totalorder %s156, %s172
      %p174 = scmp.eq.s32.totalorder %s24, 0
      %p175 = por %p173, %p174
      %p176 = scmp.le.s32.totalorder 1, %s18
      %p177 = scmp.lt.s32.totalorder %s18, 7
      %p178 = pnand %p176, %p177
      %p179 = pneg %p178
      // Predicated region
      $region9: #{neural_ode_forward.1} parent=5 // pred_check
        _
      $region10: #{neural_ode_forward.1} parent=5 // pred_check_branch
        %181 = sbr.rel (%p178) target = $region12
      $region11: #{neural_ode_forward.1} parent=5 // pred_region
        %s182 = ssub.s32 %s18, 1
        // Predicated region
        $region13: #{neural_ode_forward.1} parent=11 // pred_check
          %p183 = pneg %p77
        $region14: #{neural_ode_forward.1} parent=11 // pred_check_branch
          %185 = sbr.rel (%p183) target = $region16
        $region15: #{neural_ode_forward.1} parent=11 // pred_region
          _
        $region16: #{neural_ode_forward.1} parent=11 // pred_fallthru
          _
        // Predicated region
        $region17: #{neural_ode_forward.1} parent=11 // pred_check
          %p186 = pneg %p98
        $region18: #{neural_ode_forward.1} parent=11 // pred_check_branch
          %188 = sbr.rel (%p186) target = $region20
        $region19: #{neural_ode_forward.1} parent=11 // pred_region
          _
        $region20: #{neural_ode_forward.1} parent=11 // pred_fallthru
          _
        // Predicated region
        $region21: #{neural_ode_forward.1} parent=11 // pred_check
          %p189 = pneg %p119
        $region22: #{neural_ode_forward.1} parent=11 // pred_check_branch
          %191 = sbr.rel (%p189) target = $region24
        $region23: #{neural_ode_forward.1} parent=11 // pred_region
          _
        $region24: #{neural_ode_forward.1} parent=11 // pred_fallthru
          _
        // Predicated region
        $region25: #{neural_ode_forward.1} parent=11 // pred_check
          %p192 = pneg %p140
        $region26: #{neural_ode_forward.1} parent=11 // pred_check_branch
          %194 = sbr.rel (%p192) target = $region28
        $region27: #{neural_ode_forward.1} parent=11 // pred_region
          _
        $region28: #{neural_ode_forward.1} parent=11 // pred_fallthru
          _
      $region12: #{neural_ode_forward.1} parent=5 // pred_fallthru
        _
      %p195 = scmp.lt.s32.totalorder %s18, 6
      // Predicated region
      $region29: #{neural_ode_forward.1} parent=5 // pred_check
        %p196 = pneg %p195
      $region30: #{neural_ode_forward.1} parent=5 // pred_check_branch
        %198 = sbr.rel (%p196) target = $region32
      $region31: #{neural_ode_forward.1} parent=5 // pred_region
        // Predicated region
        $region33: #{neural_ode_forward.1} parent=31 // pred_check
          %p199 = pneg %p50
        $region34: #{neural_ode_forward.1} parent=31 // pred_check_branch
          %201 = sbr.rel (%p199) target = $region36
        $region35: #{neural_ode_forward.1} parent=31 // pred_region
          %p202 = scmp.lt.s32.totalorder %s25, 1
          %s203 = scalar_select %p202, %s25, 1
          %s204 = smul.addr %s203, 8
          %s205 = scalar_lea.vmem %s1, %s204
        $region36: #{neural_ode_forward.1} parent=31 // pred_fallthru
          _
      $region32: #{neural_ode_forward.1} parent=5 // pred_fallthru
        _
      %p206 = scmp.le.s32.totalorder 1, %s18
      %p207 = scmp.lt.s32.totalorder %s18, 7
      %p208 = pnand %p206, %p207
      %p209 = pneg %p208
      // Predicated region
      $region37: #{neural_ode_forward.1} parent=5 // pred_check
        _
      $region38: #{neural_ode_forward.1} parent=5 // pred_check_branch
        %211 = sbr.rel (%p208) target = $region40
      $region39: #{neural_ode_forward.1} parent=5 // pred_region
        %s212 = ssub.s32 %s18, 1
        %p213 = scmp.lt.s32.totalorder %s27, 1
        %s214 = scalar_select %p213, %s27, 1
        %s215 = smul.addr %s214, 8
        %s216 = scalar_lea.vmem %s1, %s215
        %p217 = pneg %p56
        %p218 = pneg %p53
        %p219 = pneg %p77
        %p220 = pneg %p74
        %p221 = pneg %p98
        %p222 = pneg %p95
        %p223 = pneg %p119
        %p224 = pneg %p116
        %p225 = pneg %p140
        %p226 = pneg %p137
        %p227 = pneg %p168
        %p228 = pneg %p165
        %s229 = sand.u32 %s155, 1
        %s230 = sand.u32 %s155, 1
        %s231 = smul.addr %s230, 32
        %s232 = scalar_lea.vmem [#allocation5], %s231
        %p233 = scmp.lt.s32.totalorder %s27, 1
        %s234 = scalar_select %p233, %s27, 1
        %s235 = smul.addr %s234, 8
        %s236 = scalar_lea.vmem %s1, %s235
        %s237 = smul.u32 4, %s28
        %p239 = scmp.eq.s32.totalorder %s28, 0
        // Predicated region
        $region41: #{neural_ode_forward.1} parent=39 // pred_check
          %p240 = pneg %p239
        $region42: #{neural_ode_forward.1} parent=39 // pred_check_branch
          %242 = sbr.rel (%p240) target = $region44
        $region43: #{neural_ode_forward.1} parent=39 // pred_region
          %v243 = vld [vmem:[%s236] sm:$0xff]
          %244 = vst [vmem:[#allocation2] sm:$0xff] %v243
        $region44: #{neural_ode_forward.1} parent=39 // pred_fallthru
          _
        %v245 = vld [vmem:[%s2] sm:$0xf]
        %v246 = vld [vmem:[%s2 + $0x4] sm:$0xf]
        %v247 = vld [vmem:[%s2 + $0x8] sm:$0xf]
        %v248 = vld [vmem:[%s2 + $0xc] sm:$0xf]
        %v249 = vld [vmem:[%s2 + $0x10] sm:$0xf]
        %v250 = vld [vmem:[%s2 + $0x14] sm:$0xf]
        %v251 = vld [vmem:[%s2 + $0x18] sm:$0xf]
        %v252 = vld [vmem:[%s2 + $0x1c] sm:$0xf]
        %v253 = vld [vmem:[%s2 + $0x20] sm:$0xf]
        %v254 = vld [vmem:[%s2 + $0x24] sm:$0xf]
        %v255 = vld [vmem:[%s2 + $0x28] sm:$0xf]
        %v256 = vld [vmem:[%s2 + $0x2c] sm:$0xf]
        %v257 = vld [vmem:[%s2 + $0x30] sm:$0xf]
        %v258 = vld [vmem:[%s2 + $0x34] sm:$0xf]
        %v259 = vld [vmem:[%s2 + $0x38] sm:$0xf]
        %v260 = vld [vmem:[%s2 + $0x3c] sm:$0xf]
        %v261 = vld [vmem:[%s4] sm:$0xf]
        %v262 = vld [vmem:[%s4 + $0x4] sm:$0xf]
        %v263 = vld [vmem:[%s4 + $0x8] sm:$0xf]
        %v264 = vld [vmem:[%s4 + $0xc] sm:$0xf]
        %v265 = vld [vmem:[%s4 + $0x10] sm:$0xf]
        %v266 = vld [vmem:[%s4 + $0x14] sm:$0xf]
        %v267 = vld [vmem:[%s4 + $0x18] sm:$0xf]
        %v268 = vld [vmem:[%s4 + $0x1c] sm:$0xf]
        %v269 = vld [vmem:[%s4 + $0x20] sm:$0xf]
        %v270 = vld [vmem:[%s4 + $0x24] sm:$0xf]
        %v271 = vld [vmem:[%s4 + $0x28] sm:$0xf]
        %v272 = vld [vmem:[%s4 + $0x2c] sm:$0xf]
        %v273 = vld [vmem:[%s4 + $0x30] sm:$0xf]
        %v274 = vld [vmem:[%s4 + $0x34] sm:$0xf]
        %v275 = vld [vmem:[%s4 + $0x38] sm:$0xf]
        %v276 = vld [vmem:[%s4 + $0x3c] sm:$0xf]
        %v277 = vld [vmem:[%s3] sm:$0x1]
        %v279 = vlaneseq
        %v280 = vshrl.u32 %v279, 7
        %v281 = vsub.s32 0, %v280
        %v282 = vrot.slane %v277, %v281
        %v284 = vld [vmem:[%s5] sm:$0x1]
        %v286 = vlaneseq
        %v287 = vshrl.u32 %v286, 7
        %v288 = vsub.s32 0, %v287
        %v289 = vrot.slane %v284, %v288
        %s291 = smul.u32 %s28, 4
        %v292 = vld [vmem:[#allocation2] sm:$0xff]
        %s293 = sadd.s32 %s291, 4294967295
        %p294 = scmp.gt.s32.totalorder %s293, 0
        %s295 = scalar_select %p294, %s293, 0
        %s296 = sld [smem:[#allocation4 + %s295]]
        %v297 = vpack.c.bf16 %v292, %v292
        %v314 = vunpack.c.l.b16 %v245
        %v315 = vunpack.c.l.b16 %v246
        %v316 = vunpack.c.l.b16 %v247
        %v317 = vunpack.c.l.b16 %v248
        %v318 = vunpack.c.l.b16 %v249
        %v319 = vunpack.c.l.b16 %v250
        %v320 = vunpack.c.l.b16 %v251
        %v321 = vunpack.c.l.b16 %v252
        %v322 = vunpack.c.l.b16 %v253
        %v323 = vunpack.c.l.b16 %v254
        %v324 = vunpack.c.l.b16 %v255
        %v325 = vunpack.c.l.b16 %v256
        %v326 = vunpack.c.l.b16 %v257
        %v327 = vunpack.c.l.b16 %v258
        %v328 = vunpack.c.l.b16 %v259
        %v329 = vunpack.c.l.b16 %v260
        %v330 = vpack.c.b16 %v315, %v314
        %v331 = vpack.c.b16 %v317, %v316
        %v332 = vpack.c.b16 %v319, %v318
        %v333 = vpack.c.b16 %v321, %v320
        %v334 = vpack.c.b16 %v323, %v322
        %v335 = vpack.c.b16 %v325, %v324
        %v336 = vpack.c.b16 %v327, %v326
        %v337 = vpack.c.b16 %v329, %v328
        %346 = vmatprep.subr.bf16.mxu0 0
        %347 = vmatpush1.bf16.msra.mxu0 %v330
        %348 = vmatprep.subr.bf16.mxu0 0
        %349 = vmatpush1.bf16.msra.mxu0 %v331
        %350 = vmatprep.subr.bf16.mxu0 0
        %351 = vmatpush1.bf16.msra.mxu0 %v332
        %352 = vmatprep.subr.bf16.mxu0 0
        %353 = vmatpush1.bf16.msra.mxu0 %v333
        %354 = vmatprep.subr.bf16.mxu0 0
        %355 = vmatpush1.bf16.msra.mxu0 %v334
        %356 = vmatprep.subr.bf16.mxu0 0
        %357 = vmatpush1.bf16.msra.mxu0 %v335
        %358 = vmatprep.subr.bf16.mxu0 0
        %359 = vmatpush1.bf16.msra.mxu0 %v336
        %360 = vmatprep.subr.bf16.mxu0 0
        %361 = vmatpush1.bf16.msra.mxu0 %v337
        %362 = vmatprep.subr.bf16.mxu0 0
        %363 = vmatpush1.bf16.msra.mxu0 0
        %364 = vmatprep.subr.bf16.mxu0 0
        %365 = vmatpush1.bf16.msra.mxu0 0
        %366 = vmatprep.subr.bf16.mxu0 0
        %367 = vmatpush1.bf16.msra.mxu0 0
        %368 = vmatprep.subr.bf16.mxu0 0
        %369 = vmatpush1.bf16.msra.mxu0 0
        %370 = vmatprep.subr.bf16.mxu0 0
        %371 = vmatpush1.bf16.msra.mxu0 0
        %372 = vmatprep.subr.bf16.mxu0 0
        %373 = vmatpush1.bf16.msra.mxu0 0
        %374 = vmatprep.subr.bf16.mxu0 0
        %375 = vmatpush1.bf16.msra.mxu0 0
        %376 = vmatprep.subr.bf16.mxu0 0
        %377 = vmatpush1.bf16.msra.mxu0 0
        %378 = vmatprep.mubr.bf16.mxu0 0
        %379 = vmatmul.mubr.bf16.gmra.mrb[0].mxu0 %v297
        %v380 = vpop.f32.mrb[0].mxu0
        %v381 = vadd.f32 %v282, %v380
        %v382 = vpop.f32.mrb[0].mxu0
        %v383 = vpop.f32.mrb[0].mxu0
        %v384 = vpop.f32.mrb[0].mxu0
        %385 = vdwg.mxu0
        %v386 = vtanh.pop %v381
        %v387 = vpack.c.bf16 %v386, %v386
        %v404 = vunpack.c.l.b16 %v261
        %v405 = vunpack.c.l.b16 %v262
        %v406 = vunpack.c.l.b16 %v263
        %v407 = vunpack.c.l.b16 %v264
        %v408 = vunpack.c.l.b16 %v265
        %v409 = vunpack.c.l.b16 %v266
        %v410 = vunpack.c.l.b16 %v267
        %v411 = vunpack.c.l.b16 %v268
        %v412 = vunpack.c.l.b16 %v269
        %v413 = vunpack.c.l.b16 %v270
        %v414 = vunpack.c.l.b16 %v271
        %v415 = vunpack.c.l.b16 %v272
        %v416 = vunpack.c.l.b16 %v273
        %v417 = vunpack.c.l.b16 %v274
        %v418 = vunpack.c.l.b16 %v275
        %v419 = vunpack.c.l.b16 %v276
        %v420 = vpack.c.b16 %v405, %v404
        %v421 = vpack.c.b16 %v407, %v406
        %v422 = vpack.c.b16 %v409, %v408
        %v423 = vpack.c.b16 %v411, %v410
        %v424 = vpack.c.b16 %v413, %v412
        %v425 = vpack.c.b16 %v415, %v414
        %v426 = vpack.c.b16 %v417, %v416
        %v427 = vpack.c.b16 %v419, %v418
        %436 = vmatprep.subr.bf16.mxu0 0
        %437 = vmatpush1.bf16.msra.mxu0 %v420
        %438 = vmatprep.subr.bf16.mxu0 0
        %439 = vmatpush1.bf16.msra.mxu0 %v421
        %440 = vmatprep.subr.bf16.mxu0 0
        %441 = vmatpush1.bf16.msra.mxu0 %v422
        %442 = vmatprep.subr.bf16.mxu0 0
        %443 = vmatpush1.bf16.msra.mxu0 %v423
        %444 = vmatprep.subr.bf16.mxu0 0
        %445 = vmatpush1.bf16.msra.mxu0 %v424
        %446 = vmatprep.subr.bf16.mxu0 0
        %447 = vmatpush1.bf16.msra.mxu0 %v425
        %448 = vmatprep.subr.bf16.mxu0 0
        %449 = vmatpush1.bf16.msra.mxu0 %v426
        %450 = vmatprep.subr.bf16.mxu0 0
        %451 = vmatpush1.bf16.msra.mxu0 %v427
        %452 = vmatprep.subr.bf16.mxu0 0
        %453 = vmatpush1.bf16.msra.mxu0 0
        %454 = vmatprep.subr.bf16.mxu0 0
        %455 = vmatpush1.bf16.msra.mxu0 0
        %456 = vmatprep.subr.bf16.mxu0 0
        %457 = vmatpush1.bf16.msra.mxu0 0
        %458 = vmatprep.subr.bf16.mxu0 0
        %459 = vmatpush1.bf16.msra.mxu0 0
        %460 = vmatprep.subr.bf16.mxu0 0
        %461 = vmatpush1.bf16.msra.mxu0 0
        %462 = vmatprep.subr.bf16.mxu0 0
        %463 = vmatpush1.bf16.msra.mxu0 0
        %464 = vmatprep.subr.bf16.mxu0 0
        %465 = vmatpush1.bf16.msra.mxu0 0
        %466 = vmatprep.subr.bf16.mxu0 0
        %467 = vmatpush1.bf16.msra.mxu0 0
        %468 = vmatprep.mubr.bf16.mxu0 0
        %469 = vmatmul.mubr.bf16.gmra.mrb[0].mxu0 %v387
        %v470 = vpop.f32.mrb[0].mxu0
        %v471 = vadd.f32 %v289, %v470
        %v472 = vpop.f32.mrb[0].mxu0
        %v473 = vpop.f32.mrb[0].mxu0
        %v474 = vpop.f32.mrb[0].mxu0
        %475 = vdwg.mxu0
        %p476 = scmp.gt.s32.totalorder %s291, 0
        %v477 = vstv %s296
        %v478 = vmul.f32 %v477, %v471
        %v479 = vadd.f32 %v292, %v478
        %s480 = scalar_select %p476, 1, 0
        %v481 = vstv %s480
        %vm482 = vcmp.eq.s32.totalorder %v481, 1
        %v483 = vsel %vm482, %v479, %v292
        %484 = vst [vmem:[%s232] sm:$0xff] %v483
        %s485 = sadd.s32 %s291, 1
        %p486 = scmp.gt.s32.totalorder %s291, 0
        %s487 = scalar_select %p486, %s291, 0
        %s488 = sld [smem:[#allocation4 + %s487]]
        %v489 = vpack.c.bf16 %v483, %v483
        %490 = vmatprep.subr.bf16.mxu0 0
        %491 = vmatpush1.bf16.msra.mxu0 %v330
        %492 = vmatprep.subr.bf16.mxu0 0
        %493 = vmatpush1.bf16.msra.mxu0 %v331
        %494 = vmatprep.subr.bf16.mxu0 0
        %495 = vmatpush1.bf16.msra.mxu0 %v332
        %496 = vmatprep.subr.bf16.mxu0 0
        %497 = vmatpush1.bf16.msra.mxu0 %v333
        %498 = vmatprep.subr.bf16.mxu0 0
        %499 = vmatpush1.bf16.msra.mxu0 %v334
        %500 = vmatprep.subr.bf16.mxu0 0
        %501 = vmatpush1.bf16.msra.mxu0 %v335
        %502 = vmatprep.subr.bf16.mxu0 0
        %503 = vmatpush1.bf16.msra.mxu0 %v336
        %504 = vmatprep.subr.bf16.mxu0 0
        %505 = vmatpush1.bf16.msra.mxu0 %v337
        %506 = vmatprep.subr.bf16.mxu0 0
        %507 = vmatpush1.bf16.msra.mxu0 0
        %508 = vmatprep.subr.bf16.mxu0 0
        %509 = vmatpush1.bf16.msra.mxu0 0
        %510 = vmatprep.subr.bf16.mxu0 0
        %511 = vmatpush1.bf16.msra.mxu0 0
        %512 = vmatprep.subr.bf16.mxu0 0
        %513 = vmatpush1.bf16.msra.mxu0 0
        %514 = vmatprep.subr.bf16.mxu0 0
        %515 = vmatpush1.bf16.msra.mxu0 0
        %516 = vmatprep.subr.bf16.mxu0 0
        %517 = vmatpush1.bf16.msra.mxu0 0
        %518 = vmatprep.subr.bf16.mxu0 0
        %519 = vmatpush1.bf16.msra.mxu0 0
        %520 = vmatprep.subr.bf16.mxu0 0
        %521 = vmatpush1.bf16.msra.mxu0 0
        %522 = vmatprep.mubr.bf16.mxu0 0
        %523 = vmatmul.mubr.bf16.gmra.mrb[0].mxu0 %v489
        %v524 = vpop.f32.mrb[0].mxu0
        %v525 = vadd.f32 %v282, %v524
        %v526 = vpop.f32.mrb[0].mxu0
        %v527 = vpop.f32.mrb[0].mxu0
        %v528 = vpop.f32.mrb[0].mxu0
        %529 = vdwg.mxu0
        %v530 = vtanh.pop %v525
        %v531 = vpack.c.bf16 %v530, %v530
        %532 = vmatprep.subr.bf16.mxu0 0
        %533 = vmatpush1.bf16.msra.mxu0 %v420
        %534 = vmatprep.subr.bf16.mxu0 0
        %535 = vmatpush1.bf16.msra.mxu0 %v421
        %536 = vmatprep.subr.bf16.mxu0 0
        %537 = vmatpush1.bf16.msra.mxu0 %v422
        %538 = vmatprep.subr.bf16.mxu0 0
        %539 = vmatpush1.bf16.msra.mxu0 %v423
        %540 = vmatprep.subr.bf16.mxu0 0
        %541 = vmatpush1.bf16.msra.mxu0 %v424
        %542 = vmatprep.subr.bf16.mxu0 0
        %543 = vmatpush1.bf16.msra.mxu0 %v425
        %544 = vmatprep.subr.bf16.mxu0 0
        %545 = vmatpush1.bf16.msra.mxu0 %v426
        %546 = vmatprep.subr.bf16.mxu0 0
        %547 = vmatpush1.bf16.msra.mxu0 %v427
        %548 = vmatprep.subr.bf16.mxu0 0
        %549 = vmatpush1.bf16.msra.mxu0 0
        %550 = vmatprep.subr.bf16.mxu0 0
        %551 = vmatpush1.bf16.msra.mxu0 0
        %552 = vmatprep.subr.bf16.mxu0 0
        %553 = vmatpush1.bf16.msra.mxu0 0
        %554 = vmatprep.subr.bf16.mxu0 0
        %555 = vmatpush1.bf16.msra.mxu0 0
        %556 = vmatprep.subr.bf16.mxu0 0
        %557 = vmatpush1.bf16.msra.mxu0 0
        %558 = vmatprep.subr.bf16.mxu0 0
        %559 = vmatpush1.bf16.msra.mxu0 0
        %560 = vmatprep.subr.bf16.mxu0 0
        %561 = vmatpush1.bf16.msra.mxu0 0
        %562 = vmatprep.subr.bf16.mxu0 0
        %563 = vmatpush1.bf16.msra.mxu0 0
        %564 = vmatprep.mubr.bf16.mxu0 0
        %565 = vmatmul.mubr.bf16.gmra.mrb[0].mxu0 %v531
        %v566 = vpop.f32.mrb[0].mxu0
        %v567 = vadd.f32 %v289, %v566
        %v568 = vpop.f32.mrb[0].mxu0
        %v569 = vpop.f32.mrb[0].mxu0
        %v570 = vpop.f32.mrb[0].mxu0
        %571 = vdwg.mxu0
        %p572 = scmp.gt.s32.totalorder %s485, 0
        %v573 = vstv %s488
        %v574 = vmul.f32 %v573, %v567
        %v575 = vadd.f32 %v483, %v574
        %s576 = scalar_select %p572, 1, 0
        %v577 = vstv %s576
        %vm578 = vcmp.eq.s32.totalorder %v577, 1
        %v579 = vsel %vm578, %v575, %v483
        %s580 = scalar_lea.vmem %s232, 8 [#allocation5]
        %581 = vst [vmem:[%s580] sm:$0xff] %v579
        %s582 = sadd.s32 %s291, 2
        %p583 = scmp.gt.s32.totalorder %s485, 0
        %s584 = scalar_select %p583, %s485, 0
        %s585 = sld [smem:[#allocation4 + %s584]]
        %v586 = vpack.c.bf16 %v579, %v579
        %587 = vmatprep.subr.bf16.mxu0 0
        %588 = vmatpush1.bf16.msra.mxu0 %v330
        %589 = vmatprep.subr.bf16.mxu0 0
        %590 = vmatpush1.bf16.msra.mxu0 %v331
        %591 = vmatprep.subr.bf16.mxu0 0
        %592 = vmatpush1.bf16.msra.mxu0 %v332
        %593 = vmatprep.subr.bf16.mxu0 0
        %594 = vmatpush1.bf16.msra.mxu0 %v333
        %595 = vmatprep.subr.bf16.mxu0 0
        %596 = vmatpush1.bf16.msra.mxu0 %v334
        %597 = vmatprep.subr.bf16.mxu0 0
        %598 = vmatpush1.bf16.msra.mxu0 %v335
        %599 = vmatprep.subr.bf16.mxu0 0
        %600 = vmatpush1.bf16.msra.mxu0 %v336
        %601 = vmatprep.subr.bf16.mxu0 0
        %602 = vmatpush1.bf16.msra.mxu0 %v337
        %603 = vmatprep.subr.bf16.mxu0 0
        %604 = vmatpush1.bf16.msra.mxu0 0
        %605 = vmatprep.subr.bf16.mxu0 0
        %606 = vmatpush1.bf16.msra.mxu0 0
        %607 = vmatprep.subr.bf16.mxu0 0
        %608 = vmatpush1.bf16.msra.mxu0 0
        %609 = vmatprep.subr.bf16.mxu0 0
        %610 = vmatpush1.bf16.msra.mxu0 0
        %611 = vmatprep.subr.bf16.mxu0 0
        %612 = vmatpush1.bf16.msra.mxu0 0
        %613 = vmatprep.subr.bf16.mxu0 0
        %614 = vmatpush1.bf16.msra.mxu0 0
        %615 = vmatprep.subr.bf16.mxu0 0
        %616 = vmatpush1.bf16.msra.mxu0 0
        %617 = vmatprep.subr.bf16.mxu0 0
        %618 = vmatpush1.bf16.msra.mxu0 0
        %619 = vmatprep.mubr.bf16.mxu0 0
        %620 = vmatmul.mubr.bf16.gmra.mrb[0].mxu0 %v586
        %v621 = vpop.f32.mrb[0].mxu0
        %v622 = vadd.f32 %v282, %v621
        %v623 = vpop.f32.mrb[0].mxu0
        %v624 = vpop.f32.mrb[0].mxu0
        %v625 = vpop.f32.mrb[0].mxu0
        %626 = vdwg.mxu0
        %v627 = vtanh.pop %v622
        %v628 = vpack.c.bf16 %v627, %v627
        %629 = vmatprep.subr.bf16.mxu0 0
        %630 = vmatpush1.bf16.msra.mxu0 %v420
        %631 = vmatprep.subr.bf16.mxu0 0
        %632 = vmatpush1.bf16.msra.mxu0 %v421
        %633 = vmatprep.subr.bf16.mxu0 0
        %634 = vmatpush1.bf16.msra.mxu0 %v422
        %635 = vmatprep.subr.bf16.mxu0 0
        %636 = vmatpush1.bf16.msra.mxu0 %v423
        %637 = vmatprep.subr.bf16.mxu0 0
        %638 = vmatpush1.bf16.msra.mxu0 %v424
        %639 = vmatprep.subr.bf16.mxu0 0
        %640 = vmatpush1.bf16.msra.mxu0 %v425
        %641 = vmatprep.subr.bf16.mxu0 0
        %642 = vmatpush1.bf16.msra.mxu0 %v426
        %643 = vmatprep.subr.bf16.mxu0 0
        %644 = vmatpush1.bf16.msra.mxu0 %v427
        %645 = vmatprep.subr.bf16.mxu0 0
        %646 = vmatpush1.bf16.msra.mxu0 0
        %647 = vmatprep.subr.bf16.mxu0 0
        %648 = vmatpush1.bf16.msra.mxu0 0
        %649 = vmatprep.subr.bf16.mxu0 0
        %650 = vmatpush1.bf16.msra.mxu0 0
        %651 = vmatprep.subr.bf16.mxu0 0
        %652 = vmatpush1.bf16.msra.mxu0 0
        %653 = vmatprep.subr.bf16.mxu0 0
        %654 = vmatpush1.bf16.msra.mxu0 0
        %655 = vmatprep.subr.bf16.mxu0 0
        %656 = vmatpush1.bf16.msra.mxu0 0
        %657 = vmatprep.subr.bf16.mxu0 0
        %658 = vmatpush1.bf16.msra.mxu0 0
        %659 = vmatprep.subr.bf16.mxu0 0
        %660 = vmatpush1.bf16.msra.mxu0 0
        %661 = vmatprep.mubr.bf16.mxu0 0
        %662 = vmatmul.mubr.bf16.gmra.mrb[0].mxu0 %v628
        %v663 = vpop.f32.mrb[0].mxu0
        %v664 = vadd.f32 %v289, %v663
        %v665 = vpop.f32.mrb[0].mxu0
        %v666 = vpop.f32.mrb[0].mxu0
        %v667 = vpop.f32.mrb[0].mxu0
        %668 = vdwg.mxu0
        %p669 = scmp.gt.s32.totalorder %s582, 0
        %v670 = vstv %s585
        %v671 = vmul.f32 %v670, %v664
        %v672 = vadd.f32 %v579, %v671
        %s673 = scalar_select %p669, 1, 0
        %v674 = vstv %s673
        %vm675 = vcmp.eq.s32.totalorder %v674, 1
        %v676 = vsel %vm675, %v672, %v579
        %s677 = scalar_lea.vmem %s232, 16 [#allocation5]
        %678 = vst [vmem:[%s677] sm:$0xff] %v676
        %s679 = sadd.s32 %s291, 3
        %p680 = scmp.gt.s32.totalorder %s582, 0
        %s681 = scalar_select %p680, %s582, 0
        %s682 = sld [smem:[#allocation4 + %s681]]
        %v683 = vpack.c.bf16 %v676, %v676
        %684 = vmatprep.subr.bf16.mxu0 0
        %685 = vmatpush1.bf16.msra.mxu0 %v330
        %686 = vmatprep.subr.bf16.mxu0 0
        %687 = vmatpush1.bf16.msra.mxu0 %v331
        %688 = vmatprep.subr.bf16.mxu0 0
        %689 = vmatpush1.bf16.msra.mxu0 %v332
        %690 = vmatprep.subr.bf16.mxu0 0
        %691 = vmatpush1.bf16.msra.mxu0 %v333
        %692 = vmatprep.subr.bf16.mxu0 0
        %693 = vmatpush1.bf16.msra.mxu0 %v334
        %694 = vmatprep.subr.bf16.mxu0 0
        %695 = vmatpush1.bf16.msra.mxu0 %v335
        %696 = vmatprep.subr.bf16.mxu0 0
        %697 = vmatpush1.bf16.msra.mxu0 %v336
        %698 = vmatprep.subr.bf16.mxu0 0
        %699 = vmatpush1.bf16.msra.mxu0 %v337
        %700 = vmatprep.subr.bf16.mxu0 0
        %701 = vmatpush1.bf16.msra.mxu0 0
        %702 = vmatprep.subr.bf16.mxu0 0
        %703 = vmatpush1.bf16.msra.mxu0 0
        %704 = vmatprep.subr.bf16.mxu0 0
        %705 = vmatpush1.bf16.msra.mxu0 0
        %706 = vmatprep.subr.bf16.mxu0 0
        %707 = vmatpush1.bf16.msra.mxu0 0
        %708 = vmatprep.subr.bf16.mxu0 0
        %709 = vmatpush1.bf16.msra.mxu0 0
        %710 = vmatprep.subr.bf16.mxu0 0
        %711 = vmatpush1.bf16.msra.mxu0 0
        %712 = vmatprep.subr.bf16.mxu0 0
        %713 = vmatpush1.bf16.msra.mxu0 0
        %714 = vmatprep.subr.bf16.mxu0 0
        %715 = vmatpush1.bf16.msra.mxu0 0
        %716 = vmatprep.mubr.bf16.mxu0 0
        %717 = vmatmul.mubr.bf16.gmra.mrb[0].mxu0 %v683
        %v718 = vpop.f32.mrb[0].mxu0
        %v719 = vadd.f32 %v282, %v718
        %v720 = vpop.f32.mrb[0].mxu0
        %v721 = vpop.f32.mrb[0].mxu0
        %v722 = vpop.f32.mrb[0].mxu0
        %723 = vdwg.mxu0
        %v724 = vtanh.pop %v719
        %v725 = vpack.c.bf16 %v724, %v724
        %726 = vmatprep.subr.bf16.mxu0 0
        %727 = vmatpush1.bf16.msra.mxu0 %v420
        %728 = vmatprep.subr.bf16.mxu0 0
        %729 = vmatpush1.bf16.msra.mxu0 %v421
        %730 = vmatprep.subr.bf16.mxu0 0
        %731 = vmatpush1.bf16.msra.mxu0 %v422
        %732 = vmatprep.subr.bf16.mxu0 0
        %733 = vmatpush1.bf16.msra.mxu0 %v423
        %734 = vmatprep.subr.bf16.mxu0 0
        %735 = vmatpush1.bf16.msra.mxu0 %v424
        %736 = vmatprep.subr.bf16.mxu0 0
        %737 = vmatpush1.bf16.msra.mxu0 %v425
        %738 = vmatprep.subr.bf16.mxu0 0
        %739 = vmatpush1.bf16.msra.mxu0 %v426
        %740 = vmatprep.subr.bf16.mxu0 0
        %741 = vmatpush1.bf16.msra.mxu0 %v427
        %742 = vmatprep.subr.bf16.mxu0 0
        %743 = vmatpush1.bf16.msra.mxu0 0
        %744 = vmatprep.subr.bf16.mxu0 0
        %745 = vmatpush1.bf16.msra.mxu0 0
        %746 = vmatprep.subr.bf16.mxu0 0
        %747 = vmatpush1.bf16.msra.mxu0 0
        %748 = vmatprep.subr.bf16.mxu0 0
        %749 = vmatpush1.bf16.msra.mxu0 0
        %750 = vmatprep.subr.bf16.mxu0 0
        %751 = vmatpush1.bf16.msra.mxu0 0
        %752 = vmatprep.subr.bf16.mxu0 0
        %753 = vmatpush1.bf16.msra.mxu0 0
        %754 = vmatprep.subr.bf16.mxu0 0
        %755 = vmatpush1.bf16.msra.mxu0 0
        %756 = vmatprep.subr.bf16.mxu0 0
        %757 = vmatpush1.bf16.msra.mxu0 0
        %758 = vmatprep.mubr.bf16.mxu0 0
        %759 = vmatmul.mubr.bf16.gmra.mrb[0].mxu0 %v725
        %v760 = vpop.f32.mrb[0].mxu0
        %v761 = vadd.f32 %v289, %v760
        %v762 = vpop.f32.mrb[0].mxu0
        %v763 = vpop.f32.mrb[0].mxu0
        %v764 = vpop.f32.mrb[0].mxu0
        %765 = vdwg.mxu0
        %p766 = scmp.gt.s32.totalorder %s679, 0
        %v767 = vstv %s682
        %v768 = vmul.f32 %v767, %v761
        %v769 = vadd.f32 %v676, %v768
        %s770 = scalar_select %p766, 1, 0
        %v771 = vstv %s770
        %vm772 = vcmp.eq.s32.totalorder %v771, 1
        %v773 = vsel %vm772, %v769, %v676
        %s774 = scalar_lea.vmem %s232, 24 [#allocation5]
        %775 = vst [vmem:[%s774] sm:$0xff] %v773
        %776 = vst [vmem:[#allocation2] sm:$0xff] %v773
        %s777 = sand.u32 %s155, 1
        %s778 = sand.u32 %s155, 1
        %s779 = smul.addr %s778, 32
        %s780 = scalar_lea.vmem [#allocation5], %s779
        // Predicated region
        $region45: #{neural_ode_forward.1} parent=39 // pred_check
          %p781 = pneg %p165
        $region46: #{neural_ode_forward.1} parent=39 // pred_check_branch
          %783 = sbr.rel (%p781) target = $region48
        $region47: #{neural_ode_forward.1} parent=39 // pred_region
          %s784 = smul.u32 4, %s28
          %s785 = smul.addr %s784, 2
          %s786 = sadd.s32 %s27, %s785
          %s787 = smul.addr %s786, 8
          %s788 = scalar_lea.vmem %s6, %s787
          // Predicated region
          $region49: #{neural_ode_forward.1} parent=47 // pred_check
            _
          $region50: #{neural_ode_forward.1} parent=47 // pred_check_branch
            %790 = sbr.rel (0) target = $region52
          $region51: #{neural_ode_forward.1} parent=47 // pred_region
            // Predicated region
            $region53: #{neural_ode_forward.1} parent=51 // pred_check
              _
            $region54: #{neural_ode_forward.1} parent=51 // pred_check_branch
              %792 = sbr.rel (0) target = $region56
            $region55: #{neural_ode_forward.1} parent=51 // pred_region
              // Predicated region
              $region68: #{neural_ode_forward.1} parent=55 // pred_check
                _
              $region69: #{neural_ode_forward.1} parent=55 // pred_check_branch
                %813 = sbr.rel (0) target = $region71
              $region70: #{neural_ode_forward.1} parent=55 // pred_region
                loop: start=0, step=1, limit=1
                $region72: #{neural_ode_forward.1} parent=70 // loop_pre_header
                  _
                $region73: #{neural_ode_forward.1} parent=70 // loop_header
                  %s815 = sphi 0, %s819
                  %p816 = scmp.ge.s32.totalorder %s815, 1
                  %s820 = sphi %s780, %s780
                  %s821 = sphi %s788, %s788
                $region74: #{neural_ode_forward.1} parent=70 // loop_header_branch
                  %818 = sbr.rel (%p816) target = $region78
                $region75: #{neural_ode_forward.1} parent=70 // loop_body
                  %v822 = vld [vmem:[%s820] sm:$0xff]
                  %823 = vst [vmem:[%s821] sm:$0xff] %v822
                  %v824 = vld [vmem:[%s820 + $0x8] sm:$0xff]
                  %825 = vst [vmem:[%s821 + $0x10] sm:$0xff] %v824
                  %v826 = vld [vmem:[%s820 + $0x10] sm:$0xff]
                  %827 = vst [vmem:[%s821 + $0x20] sm:$0xff] %v826
                  %v828 = vld [vmem:[%s820 + $0x18] sm:$0xff]
                  %829 = vst [vmem:[%s821 + $0x30] sm:$0xff] %v828
                $region76: #{neural_ode_forward.1} parent=70 // loop_footer
                  %s819 = sadd.s32 1, %s815
                $region77: #{neural_ode_forward.1} parent=70 // loop_footer_branch
                  %814 = sbr.rel target = $region73
                $region78: #{neural_ode_forward.1} parent=70 // loop_exit
                  _
              $region71: #{neural_ode_forward.1} parent=55 // pred_fallthru
                _
              // Predicated region
              $region79: #{neural_ode_forward.1} parent=55 // pred_check
                _
              $region80: #{neural_ode_forward.1} parent=55 // pred_check_branch
                %831 = sbr.rel target = $region82
              $region81: #{neural_ode_forward.1} parent=55 // pred_region
                _
              $region82: #{neural_ode_forward.1} parent=55 // pred_fallthru
                _
            $region56: #{neural_ode_forward.1} parent=51 // pred_fallthru
              _
            // Predicated region
            $region57: #{neural_ode_forward.1} parent=51 // pred_check
              _
            $region58: #{neural_ode_forward.1} parent=51 // pred_check_branch
              %794 = sbr.rel target = $region60
            $region59: #{neural_ode_forward.1} parent=51 // pred_region
              loop: start=0, step=1, limit=1
              $region61: #{neural_ode_forward.1} parent=59 // loop_pre_header
                _
              $region62: #{neural_ode_forward.1} parent=59 // loop_header
                %s797 = sphi 0, %s801
                %p798 = scmp.ge.s32.totalorder %s797, 1
                %s802 = sphi %s780, %s780
                %s803 = sphi %s788, %s788
              $region63: #{neural_ode_forward.1} parent=59 // loop_header_branch
                %800 = sbr.rel (%p798) target = $region67
              $region64: #{neural_ode_forward.1} parent=59 // loop_body
                %v804 = vld [vmem:[%s802] sm:$0xff]
                %805 = vst [vmem:[%s803] sm:$0xff] %v804
                %v806 = vld [vmem:[%s802 + $0x8] sm:$0xff]
                %807 = vst [vmem:[%s803 + $0x10] sm:$0xff] %v806
                %v808 = vld [vmem:[%s802 + $0x10] sm:$0xff]
                %809 = vst [vmem:[%s803 + $0x20] sm:$0xff] %v808
                %v810 = vld [vmem:[%s802 + $0x18] sm:$0xff]
                %811 = vst [vmem:[%s803 + $0x30] sm:$0xff] %v810
              $region65: #{neural_ode_forward.1} parent=59 // loop_footer
                %s801 = sadd.s32 1, %s797
              $region66: #{neural_ode_forward.1} parent=59 // loop_footer_branch
                %796 = sbr.rel target = $region62
              $region67: #{neural_ode_forward.1} parent=59 // loop_exit
                _
            $region60: #{neural_ode_forward.1} parent=51 // pred_fallthru
              _
          $region52: #{neural_ode_forward.1} parent=47 // pred_fallthru
            _
          %832 = vnop
        $region48: #{neural_ode_forward.1} parent=39 // pred_fallthru
          _
      $region40: #{neural_ode_forward.1} parent=5 // pred_fallthru
        _
      %p833 = scmp.le.s32.totalorder 2, %s18
      // Predicated region
      $region83: #{neural_ode_forward.1} parent=5 // pred_check
        %p834 = pneg %p833
      $region84: #{neural_ode_forward.1} parent=5 // pred_check_branch
        %836 = sbr.rel (%p834) target = $region86
      $region85: #{neural_ode_forward.1} parent=5 // pred_region
        %s837 = ssub.s32 %s18, 2
        // Predicated region
        $region87: #{neural_ode_forward.1} parent=85 // pred_check
          %p838 = pneg %p171
        $region88: #{neural_ode_forward.1} parent=85 // pred_check_branch
          %840 = sbr.rel (%p838) target = $region90
        $region89: #{neural_ode_forward.1} parent=85 // pred_region
          %s841 = sand.u32 %s156, 1
          %s842 = sand.u32 %s156, 1
          %s843 = smul.addr %s842, 32
          %s844 = scalar_lea.vmem [#allocation5], %s843
        $region90: #{neural_ode_forward.1} parent=85 // pred_fallthru
          _
      $region86: #{neural_ode_forward.1} parent=5 // pred_fallthru
        _
    $region6: #{neural_ode_forward.1} parent=1 // loop_footer
      %s22 = sadd.s32 1, %s18
    $region7: #{neural_ode_forward.1} parent=1 // loop_footer_branch
      %17 = sbr.rel target = $region3
    $region8: #{neural_ode_forward.1} parent=1 // loop_exit
      _

</llo_original>
